<compile_context>
chip_gen: v7x
topology: tpu7x:2x2x1
jax: 0.10.0
libtpu: 0.0.40
codegen_flags: <defaults>
</compile_context>

<pallas_src>
import jax
import jax.numpy as jnp
from jax.experimental import pallas as pl
from jax.experimental.pallas import tpu as pltpu


def _rope_kernel(x_ref, cos_ref, sin_ref, out_ref):
    """One grid step == (one batch element, one seq tile).

    x_ref  : (Ts, H, D)   activation tile
    cos_ref: (Ts, 1, D)   cos table, duplicated per pair:  [c0,c0,c1,c1,...]
    sin_ref: (Ts, 1, D)   sin table with sign baked in:    [-s0,+s0,-s1,+s1,...]
    out_ref: (Ts, H, D)
    """
    x = x_ref[...].astype(jnp.float32)          # (Ts, H, D)
    cos = cos_ref[...]                          # (Ts, 1, D) f32
    sin = sin_ref[...]                          # (Ts, 1, D) f32

    d = x.shape[-1]
    # Adjacent-pair swap via lane rolls (XLU) + parity select (VPU):
    #   even lane 2i   -> x[2i+1]   (roll by -1  == roll by D-1)
    #   odd  lane 2i+1 -> x[2i]     (roll by +1)
    left = pltpu.roll(x, shift=d - 1, axis=2)   # left[d']  = x[d'+1]
    right = pltpu.roll(x, shift=1, axis=2)      # right[d'] = x[d'-1]
    lane = jax.lax.broadcasted_iota(jnp.int32, x.shape, 2)
    swapped = jnp.where((lane % 2) == 0, left, right)

    # out[2i]   = x[2i]*cos_i   + x[2i+1]*(-sin_i)
    # out[2i+1] = x[2i+1]*cos_i + x[2i]  *(+sin_i)
    out = x * cos + swapped * sin
    out_ref[...] = out.astype(out_ref.dtype)


def rotary_positional_embedding(x, base=10000.0, seq_block=None):
    """x: (B, S, H, D)  ->  (B, S, H, D), pairs (0,1),(2,3),... rotated by RoPE."""
    B, S, H, D = x.shape
    assert D % 2 == 0, "head_dim must be even"
    half = D // 2

    # ---- tiny table prep in plain JAX (mirrors the PyTorch forward exactly,
    #      including the permute(1,0,2).reshape(1,S,1,half) index scramble) ----
    pos = jnp.arange(S, dtype=jnp.float32)[:, None]                  # (S, 1)
    freq_seq = jnp.arange(half, dtype=jnp.float32)                   # (half,)
    freq = jnp.power(jnp.float32(base), -2.0 * freq_seq / D)         # (half,)
    angle = pos * freq[None, :]                                      # (S, half)
    sin = jnp.sin(angle)
    cos = jnp.cos(angle)
    # torch: (S,half,1) -> permute(1,0,2) -> reshape(1,S,1,half)
    sin_scr = sin.T.reshape(S, half)
    cos_scr = cos.T.reshape(S, half)

    # Interleave to full width and bake the rotation sign into the sin table.
    cos_full = jnp.repeat(cos_scr, 2, axis=-1)                       # (S, D)
    sign = jnp.tile(jnp.array([-1.0, 1.0], dtype=jnp.float32), half) # (D,)
    sin_full = jnp.repeat(sin_scr, 2, axis=-1) * sign                # (S, D)
    cos_full = cos_full[:, None, :]                                  # (S, 1, D)
    sin_full = sin_full[:, None, :]                                  # (S, 1, D)

    # ---- tiling ----
    if seq_block is None:
        seq_block = S
        for cand in (512, 256, 128):
            if S % cand == 0:
                seq_block = cand
                break
    assert S % seq_block == 0, "seq_block must divide seq_len"
    grid = (B, S // seq_block)

    return pl.pallas_call(
        _rope_kernel,
        out_shape=jax.ShapeDtypeStruct((B, S, H, D), x.dtype),
        grid_spec=pltpu.PrefetchScalarGridSpec(
            num_scalar_prefetch=0,
            grid=grid,
            in_specs=[
                pl.BlockSpec((pl.Squeezed(), seq_block, H, D),
                             lambda b, s: (b, s, 0, 0)),
                pl.BlockSpec((seq_block, 1, D), lambda b, s: (s, 0, 0)),
                pl.BlockSpec((seq_block, 1, D), lambda b, s: (s, 0, 0)),
            ],
            out_specs=pl.BlockSpec((pl.Squeezed(), seq_block, H, D),
                                   lambda b, s: (b, s, 0, 0)),
        ),
        compiler_params=pltpu.CompilerParams(
            dimension_semantics=("parallel", "parallel")),
    )(x, cos_full, sin_full)


def _reference(x, base=10000.0):
    """Literal JAX translation of the PyTorch RotaryPositionalEmbedding.forward."""
    B, S, H, D = x.shape
    half = D // 2
    pos = jnp.arange(S, dtype=x.dtype)[:, None]
    freq_seq = jnp.arange(half, dtype=x.dtype)
    freq = jnp.power(jnp.asarray(base, x.dtype), -2.0 * freq_seq / D)[None, :]
    angle = pos * freq
    sin = jnp.sin(angle)[..., None]                       # (S, half, 1)
    cos = jnp.cos(angle)[..., None]
    sin = jnp.transpose(sin, (1, 0, 2)).reshape(1, S, 1, half)
    cos = jnp.transpose(cos, (1, 0, 2)).reshape(1, S, 1, half)
    x0 = x[..., 0::2]
    x1 = x[..., 1::2]
    rx0 = x0 * cos - x1 * sin
    rx1 = x1 * cos + x0 * sin
    out = jnp.zeros_like(x)
    out = out.at[..., 0::2].set(rx0)
    out = out.at[..., 1::2].set(rx1)
    return out


if __name__ == "__main__":
    # Small shapes consistent with [batch, seq_len, num_heads, head_dim];
    # head_dim=128 keeps blocks lane-dense (full 128-lane vregs, unmasked stores).
    bsz, seq_len, num_heads, head_dim = 2, 8, 4, 128

    key = jax.random.PRNGKey(0)
    x = jax.random.normal(key, (bsz, seq_len, num_heads, head_dim),
                          dtype=jnp.float32)

    out = rotary_positional_embedding(x)
    out = jax.block_until_ready(out)

    ref = _reference(x)
    assert out.shape == (bsz, seq_len, num_heads, head_dim)
    assert jnp.allclose(out, ref, atol=1e-5, rtol=1e-5), "mismatch vs reference"

    print("KERNEL_OK")
</pallas_src>

<mosaic_0001>
module attributes {stable_mosaic.version = 11 : i64} {
  func.func @_rope_kernel(%arg0: i32, %arg1: i32, %arg2: memref<1x8x4x128xf32, #tpu.memory_space<vmem>>, %arg3: memref<8x1x128xf32, #tpu.memory_space<vmem>>, %arg4: memref<8x1x128xf32, #tpu.memory_space<vmem>>, %arg5: memref<1x8x4x128xf32, #tpu.memory_space<vmem>>) attributes {dimension_semantics = [#tpu.dimension_semantics<parallel>, #tpu.dimension_semantics<parallel>], iteration_bounds = array<i64: 2, 1>, scalar_prefetch = 0 : i64, scratch_operands = 0 : i64, tpu.core_type = #tpu.core_type<tc>, window_params = [{transform_indices = @transform_0, window_bounds = array<i64: 1, 8, 4, 128>}, {transform_indices = @transform_1, window_bounds = array<i64: 8, 1, 128>}, {transform_indices = @transform_2, window_bounds = array<i64: 8, 1, 128>}, {transform_indices = @transform_3, window_bounds = array<i64: 1, 8, 4, 128>}]} {
    %c0 = arith.constant 0 : index
    %c0_0 = arith.constant 0 : index
    %c0_1 = arith.constant 0 : index
    %c0_2 = arith.constant 0 : index
    %0 = vector.load %arg2[%c0, %c0_0, %c0_1, %c0_2] : memref<1x8x4x128xf32, #tpu.memory_space<vmem>>, vector<1x8x4x128xf32>
    %1 = vector.shape_cast %0 : vector<1x8x4x128xf32> to vector<8x4x128xf32>
    %c0_3 = arith.constant 0 : index
    %c0_4 = arith.constant 0 : index
    %c0_5 = arith.constant 0 : index
    %2 = vector.load %arg3[%c0_3, %c0_4, %c0_5] : memref<8x1x128xf32, #tpu.memory_space<vmem>>, vector<8x1x128xf32>
    %c0_6 = arith.constant 0 : index
    %c0_7 = arith.constant 0 : index
    %c0_8 = arith.constant 0 : index
    %3 = vector.load %arg4[%c0_6, %c0_7, %c0_8] : memref<8x1x128xf32, #tpu.memory_space<vmem>>, vector<8x1x128xf32>
    %c127_i32 = arith.constant 127 : i32
    %4 = tpu.dynamic_rotate %1 by %c127_i32 dim 2 : vector<8x4x128xf32>, i32 -> vector<8x4x128xf32>
    %c1_i32 = arith.constant 1 : i32
    %5 = tpu.dynamic_rotate %1 by %c1_i32 dim 2 : vector<8x4x128xf32>, i32 -> vector<8x4x128xf32>
    %6 = tpu.iota {dimensions = array<i32: 2>} : vector<8x4x128xi32>
    %c2_i32 = arith.constant 2 : i32
    %c0_i32 = arith.constant 0 : i32
    %7 = arith.cmpi eq, %c2_i32, %c0_i32 : i32
    %c1_i32_9 = arith.constant 1 : i32
    %8 = arith.select %7, %c1_i32_9, %c2_i32 : i32
    %9 = vector.broadcast %8 : i32 to vector<8x4x128xi32>
    %10 = arith.remsi %6, %9 : vector<8x4x128xi32>
    %c0_i32_10 = arith.constant 0 : i32
    %11 = vector.broadcast %c0_i32_10 : i32 to vector<8x4x128xi32>
    %12 = arith.cmpi ne, %10, %11 : vector<8x4x128xi32>
    %c0_i32_11 = arith.constant 0 : i32
    %13 = vector.broadcast %c0_i32_11 : i32 to vector<8x4x128xi32>
    %14 = arith.cmpi slt, %10, %13 : vector<8x4x128xi32>
    %c0_i32_12 = arith.constant 0 : i32
    %15 = arith.cmpi slt, %8, %c0_i32_12 : i32
    %16 = vector.broadcast %15 : i1 to vector<8x4x128xi1>
    %17 = vector.broadcast %16 : vector<8x4x128xi1> to vector<8x4x128xi1>
    %18 = arith.xori %14, %17 : vector<8x4x128xi1>
    %19 = arith.andi %18, %12 : vector<8x4x128xi1>
    %20 = vector.broadcast %8 : i32 to vector<8x4x128xi32>
    %21 = arith.addi %10, %20 : vector<8x4x128xi32>
    %22 = arith.select %19, %21, %10 : vector<8x4x128xi1>, vector<8x4x128xi32>
    %c0_i32_13 = arith.constant 0 : i32
    %23 = vector.broadcast %c0_i32_13 : i32 to vector<8x4x128xi32>
    %24 = arith.cmpi eq, %22, %23 : vector<8x4x128xi32>
    %25 = arith.select %24, %4, %5 : vector<8x4x128xi1>, vector<8x4x128xf32>
    %26 = vector.broadcast %2 : vector<8x1x128xf32> to vector<8x4x128xf32>
    %27 = arith.mulf %1, %26 : vector<8x4x128xf32>
    %28 = vector.broadcast %3 : vector<8x1x128xf32> to vector<8x4x128xf32>
    %29 = arith.mulf %25, %28 : vector<8x4x128xf32>
    %30 = arith.addf %27, %29 : vector<8x4x128xf32>
    %c0_14 = arith.constant 0 : index
    %c0_15 = arith.constant 0 : index
    %c0_16 = arith.constant 0 : index
    %c0_17 = arith.constant 0 : index
    %31 = vector.load %arg5[%c0_14, %c0_15, %c0_16, %c0_17] : memref<1x8x4x128xf32, #tpu.memory_space<vmem>>, vector<1x8x4x128xf32>
    %32 = vector.shape_cast %31 : vector<1x8x4x128xf32> to vector<8x4x128xf32>
    %33 = vector.shape_cast %30 : vector<8x4x128xf32> to vector<1x8x4x128xf32>
    tpu.vector_store %arg5[%c0_14, %c0_15, %c0_16, %c0_17], %33 {strides = array<i32>} : memref<1x8x4x128xf32, #tpu.memory_space<vmem>>, vector<1x8x4x128xf32>,
    return
  }
  func.func @transform_0(%arg0: i32, %arg1: i32) -> (i32, i32, i32, i32) {
    %c0_i32 = arith.constant 0 : i32
    %c0_i32_0 = arith.constant 0 : i32
    %c0_i32_1 = arith.constant 0 : i32
    return %arg0, %arg1, %c0_i32, %c0_i32_0 : i32, i32, i32, i32
  }
  func.func @transform_1(%arg0: i32, %arg1: i32) -> (i32, i32, i32) {
    %c0_i32 = arith.constant 0 : i32
    %c0_i32_0 = arith.constant 0 : i32
    %c0_i32_1 = arith.constant 0 : i32
    return %arg1, %c0_i32, %c0_i32_0 : i32, i32, i32
  }
  func.func @transform_2(%arg0: i32, %arg1: i32) -> (i32, i32, i32) {
    %c0_i32 = arith.constant 0 : i32
    %c0_i32_0 = arith.constant 0 : i32
    %c0_i32_1 = arith.constant 0 : i32
    return %arg1, %c0_i32, %c0_i32_0 : i32, i32, i32
  }
  func.func @transform_3(%arg0: i32, %arg1: i32) -> (i32, i32, i32, i32) {
    %c0_i32 = arith.constant 0 : i32
    %c0_i32_0 = arith.constant 0 : i32
    %c0_i32_1 = arith.constant 0 : i32
    return %arg0, %arg1, %c0_i32, %c0_i32_0 : i32, i32, i32, i32
  }
}

</mosaic_0001>

<llo_original>
// kernel: tpu_custom_call.1
$region0: #{tpu_custom_call.1}
  #allocation0 [shape = 'u32[]', space=smem, size = 0x4, offset = 0x4, fixed_abs, tag = 'smem constant byte address 0x4 - core index']
  #allocation1 [shape = 'u32[144,128]{1,0:T(1,128)}', space=vmem, size = 0x12000, scoped, tag = 'internal scratch']
  %s0 = inlined_call_operand.hbm [shape: f32[2,8,4,128], index: 0, kind: input, shape index: {}]
  %s1 = inlined_call_operand.hbm [shape: f32[8,1,128], index: 1, kind: input, shape index: {}]
  %s2 = inlined_call_operand.hbm [shape: f32[8,1,128], index: 2, kind: input, shape index: {}]
  %s3 = inlined_call_operand.hbm [shape: f32[2,8,4,128], index: 3, kind: output, shape index: {}]
  %s4 = sld [smem:[#allocation0]]
  $region57: #{tpu_custom_call.1} parent=0
    _
  %s6 = ssub.s32 1, %s4
  %s7 = scalar_select 0, %s6, %s4
  $region1: #{tpu_custom_call.1} parent=0
    #allocation2 [shape = 'u8[32768]{0}', space=vmem, size = 0x8000, scoped, tag = 'input window, operand 0']
    #allocation3 [shape = 's32[2]{0}', space=sflag, size = 0x8, scoped, tag = 'scoped memory for tpu_custom_call.1']
    #allocation4 [shape = 's32[2]{0}', space=sflag, size = 0x8, scoped, tag = 'scoped memory for tpu_custom_call.1']
    #allocation5 [shape = 'u8[4096]{0}', space=vmem, size = 0x1000, scoped, tag = 'input window, operand 1, single buffered']
    #allocation6 [shape = 's32[1]{0}', space=sflag, size = 0x4, scoped, tag = 'scoped memory for tpu_custom_call.1']
    #allocation7 [shape = 'u8[4096]{0}', space=vmem, size = 0x1000, scoped, tag = 'input window, operand 2, single buffered']
    #allocation8 [shape = 'u8[32768]{0}', space=vmem, size = 0x8000, scoped, tag = 'output window, operand 0']
    %8 = vsyncpa [#allocation3], 0
    %s9 = scalar_lea.sflag [#allocation3], 1
    %10 = vsyncpa %s9, 0
    %11 = vsyncpa [#allocation6], 0
    %12 = vsyncpa [#allocation4], 0
    %s13 = scalar_lea.sflag [#allocation4], 1
    %14 = vsyncpa %s13, 0
    loop: start=0, step=1, limit=4
    $region2: #{tpu_custom_call.1} parent=1 // loop_pre_header
      _
    $region3: #{tpu_custom_call.1} parent=1 // loop_header
      %s16 = sphi 0, %s20
      %p17 = scmp.ge.s32.totalorder %s16, 4
      %s23 = sphi 0, %s35
      %s24 = sphi 0, %s31
      %s25 = sphi 0, %s23
      %s26 = sphi 0, %s24
      %s27 = sphi 0, %s25
      %s28 = sphi 0, %s26
      %s40 = sphi 0, %s42
      %s43 = sphi 0, %s40
      %s44 = sphi 0, %s43
      %s60 = sphi 0, %s44
      %s66 = sphi 0, %s68
      %s69 = sphi 0, %s66
      %s70 = sphi 0, %s69
      %s86 = sphi 0, %s70
      %s92 = sphi 0, %s94
      %s95 = sphi 0, %s92
      %s96 = sphi 0, %s95
      %s112 = sphi 0, %s96
      %s120 = sphi 0, %s122
      %s123 = sphi 0, %s120
      %s124 = sphi 0, %s123
      %s140 = sphi 0, %s124
    $region4: #{tpu_custom_call.1} parent=1 // loop_header_branch
      %19 = sbr.rel (%p17) target = $region8
    $region5: #{tpu_custom_call.1} parent=1 // loop_body
      %s21 = ssub.s32 %s16, 1
      %s22 = ssub.s32 %s16, 2
      %s29 = sadd.s32 1, %s24
      %p30 = scmp.ge.s32.totalorder %s29, 1
      %s31 = scalar_select %p30, 0, %s29
      %s32 = sadd.s32 1, %s23
      %s33 = scalar_select %p30, %s32, %s23
      %p34 = scmp.ge.s32.totalorder %s33, 2
      %s35 = scalar_select %p34, 0, %s33
      %s36 = ssub.s32 %s23, %s35
      %s37 = ssub.s32 %s24, %s31
      %s38 = sor.u32 %s36, %s37
      %p39 = scmp.eq.s32.totalorder %s38, 0
      %s41 = sadd.s32 %s40, 1
      %s42 = scalar_select %p39, %s40, %s41
      %p45 = pneg %p39
      %p46 = scmp.eq.s32.totalorder %s16, 1
      %p47 = por %p45, %p46
      %p48 = scmp.ne.s32.totalorder %s40, %s43
      %p49 = scmp.eq.s32.totalorder %s16, 0
      %p50 = por %p48, %p49
      %p51 = scmp.ne.s32.totalorder %s40, %s43
      %p52 = scmp.eq.s32.totalorder %s21, 1
      %p53 = por %p51, %p52
      %p54 = scmp.ne.s32.totalorder %s43, %s44
      %p55 = scmp.eq.s32.totalorder %s21, 0
      %p56 = por %p54, %p55
      %p57 = scmp.ne.s32.totalorder %s43, %s44
      %p58 = scmp.eq.s32.totalorder %s22, 1
      %p59 = por %p57, %p58
      %p61 = scmp.ne.s32.totalorder %s44, %s60
      %p62 = scmp.eq.s32.totalorder %s22, 0
      %p63 = por %p61, %p62
      %s64 = ssub.s32 %s24, %s31
      %p65 = scmp.eq.s32.totalorder %s64, 0
      %s67 = sadd.s32 %s66, 1
      %s68 = scalar_select %p65, %s66, %s67
      %p71 = pneg %p65
      %p72 = scmp.eq.s32.totalorder %s16, 1
      %p73 = por %p71, %p72
      %p74 = scmp.ne.s32.totalorder %s66, %s69
      %p75 = scmp.eq.s32.totalorder %s16, 0
      %p76 = por %p74, %p75
      %p77 = scmp.ne.s32.totalorder %s66, %s69
      %p78 = scmp.eq.s32.totalorder %s21, 1
      %p79 = por %p77, %p78
      %p80 = scmp.ne.s32.totalorder %s69, %s70
      %p81 = scmp.eq.s32.totalorder %s21, 0
      %p82 = por %p80, %p81
      %p83 = scmp.ne.s32.totalorder %s69, %s70
      %p84 = scmp.eq.s32.totalorder %s22, 1
      %p85 = por %p83, %p84
      %p87 = scmp.ne.s32.totalorder %s70, %s86
      %p88 = scmp.eq.s32.totalorder %s22, 0
      %p89 = por %p87, %p88
      %s90 = ssub.s32 %s24, %s31
      %p91 = scmp.eq.s32.totalorder %s90, 0
      %s93 = sadd.s32 %s92, 1
      %s94 = scalar_select %p91, %s92, %s93
      %p97 = pneg %p91
      %p98 = scmp.eq.s32.totalorder %s16, 1
      %p99 = por %p97, %p98
      %p100 = scmp.ne.s32.totalorder %s92, %s95
      %p101 = scmp.eq.s32.totalorder %s16, 0
      %p102 = por %p100, %p101
      %p103 = scmp.ne.s32.totalorder %s92, %s95
      %p104 = scmp.eq.s32.totalorder %s21, 1
      %p105 = por %p103, %p104
      %p106 = scmp.ne.s32.totalorder %s95, %s96
      %p107 = scmp.eq.s32.totalorder %s21, 0
      %p108 = por %p106, %p107
      %p109 = scmp.ne.s32.totalorder %s95, %s96
      %p110 = scmp.eq.s32.totalorder %s22, 1
      %p111 = por %p109, %p110
      %p113 = scmp.ne.s32.totalorder %s96, %s112
      %p114 = scmp.eq.s32.totalorder %s22, 0
      %p115 = por %p113, %p114
      %s116 = ssub.s32 %s23, %s35
      %s117 = ssub.s32 %s24, %s31
      %s118 = sor.u32 %s116, %s117
      %p119 = scmp.eq.s32.totalorder %s118, 0
      %s121 = sadd.s32 %s120, 1
      %s122 = scalar_select %p119, %s120, %s121
      %p125 = pneg %p119
      %p126 = scmp.eq.s32.totalorder %s16, 1
      %p127 = por %p125, %p126
      %p128 = scmp.ne.s32.totalorder %s120, %s123
      %p129 = scmp.eq.s32.totalorder %s16, 0
      %p130 = por %p128, %p129
      %p131 = scmp.ne.s32.totalorder %s120, %s123
      %p132 = scmp.eq.s32.totalorder %s21, 1
      %p133 = por %p131, %p132
      %p134 = scmp.ne.s32.totalorder %s123, %s124
      %p135 = scmp.eq.s32.totalorder %s21, 0
      %p136 = por %p134, %p135
      %p137 = scmp.ne.s32.totalorder %s123, %s124
      %p138 = scmp.eq.s32.totalorder %s22, 1
      %p139 = por %p137, %p138
      %p141 = scmp.ne.s32.totalorder %s124, %s140
      %p142 = scmp.eq.s32.totalorder %s22, 0
      %p143 = por %p141, %p142
      %p144 = scmp.le.s32.totalorder 1, %s16
      %p145 = scmp.lt.s32.totalorder %s16, 3
      %p146 = pnand %p144, %p145
      %p147 = pneg %p146
      // Predicated region
      $region9: #{tpu_custom_call.1} parent=5 // pred_check
        _
      $region10: #{tpu_custom_call.1} parent=5 // pred_check_branch
        %149 = sbr.rel (%p146) target = $region12
      $region11: #{tpu_custom_call.1} parent=5 // pred_region
        %s150 = ssub.s32 %s16, 1
        // Predicated region
        $region13: #{tpu_custom_call.1} parent=11 // pred_check
          %p151 = pneg %p82
        $region14: #{tpu_custom_call.1} parent=11 // pred_check_branch
          %153 = sbr.rel (%p151) target = $region16
        $region15: #{tpu_custom_call.1} parent=11 // pred_region
          %s154 = smul.u32 8, %s26
          %s156 = ssub.s32 128, 128
          %157 = vsyncadd [#allocation6], %s156
          %s158 = smul.addr %s154, 16
          %s159 = scalar_lea.hbm %s1, %s158
          %s160 = sshll.u32 [#allocation5], 4
          %s161 = int_to_ptr.vmem [resolvable:$true] %s160
          %166 = dma.hbm_to_vmem [thread:$0]  %s159, 128, %s161, [#allocation6], 16, 16, 1
        $region16: #{tpu_custom_call.1} parent=11 // pred_fallthru
          _
        // Predicated region
        $region17: #{tpu_custom_call.1} parent=11 // pred_check
          %p167 = pneg %p108
        $region18: #{tpu_custom_call.1} parent=11 // pred_check_branch
          %169 = sbr.rel (%p167) target = $region20
        $region19: #{tpu_custom_call.1} parent=11 // pred_region
          %s170 = smul.u32 8, %s26
          %s172 = ssub.s32 128, 128
          %173 = vsyncadd [#allocation6], %s172
          %s174 = smul.addr %s170, 16
          %s175 = scalar_lea.hbm %s2, %s174
          %s176 = sshll.u32 [#allocation7], 4
          %s177 = int_to_ptr.vmem [resolvable:$true] %s176
          %182 = dma.hbm_to_vmem [thread:$0]  %s175, 128, %s177, [#allocation6], 16, 16, 1
        $region20: #{tpu_custom_call.1} parent=11 // pred_fallthru
          _
      $region12: #{tpu_custom_call.1} parent=5 // pred_fallthru
        _
      %p183 = scmp.lt.s32.totalorder %s16, 2
      // Predicated region
      $region21: #{tpu_custom_call.1} parent=5 // pred_check
        %p184 = pneg %p183
      $region22: #{tpu_custom_call.1} parent=5 // pred_check_branch
        %186 = sbr.rel (%p184) target = $region24
      $region23: #{tpu_custom_call.1} parent=5 // pred_region
        // Predicated region
        $region25: #{tpu_custom_call.1} parent=23 // pred_check
          %p187 = pneg %p50
        $region26: #{tpu_custom_call.1} parent=23 // pred_check_branch
          %189 = sbr.rel (%p187) target = $region28
        $region27: #{tpu_custom_call.1} parent=23 // pred_region
          %s190 = sand.u32 %s40, 1
          %s191 = scalar_lea.sflag [#allocation3], %s190
          %s192 = sand.u32 %s40, 1
          %s193 = smul.addr %s192, 32
          %s194 = scalar_lea.vmem [#allocation2], %s193
          %s195 = smul.u32 8, %s24
          %s197 = ssub.s32 512, 512
          %198 = vsyncadd %s191, %s197
          %s199 = smul.addr %s23, 8
          %s200 = sadd.s32 %s195, %s199
          %s201 = smul.addr %s200, 64
          %s202 = scalar_lea.hbm %s0, %s201
          %s203 = sshll.u32 %s194, 4
          %s204 = int_to_ptr.vmem [resolvable:$true] %s203
          %209 = dma.hbm_to_vmem [thread:$0]  %s202, 512, %s204, %s191, 64, 64, 4
        $region28: #{tpu_custom_call.1} parent=23 // pred_fallthru
          _
      $region24: #{tpu_custom_call.1} parent=5 // pred_fallthru
        _
      %p210 = scmp.le.s32.totalorder 1, %s16
      %p211 = scmp.lt.s32.totalorder %s16, 3
      %p212 = pnand %p210, %p211
      %p213 = pneg %p212
      // Predicated region
      $region29: #{tpu_custom_call.1} parent=5 // pred_check
        _
      $region30: #{tpu_custom_call.1} parent=5 // pred_check_branch
        %215 = sbr.rel (%p212) target = $region32
      $region31: #{tpu_custom_call.1} parent=5 // pred_region
        %s216 = ssub.s32 %s16, 1
        %s217 = sand.u32 %s43, 1
        %s218 = scalar_lea.sflag [#allocation3], %s217
        %s219 = sand.u32 %s43, 1
        %s220 = smul.addr %s219, 32
        %s221 = scalar_lea.vmem [#allocation2], %s220
        // Predicated region
        $region33: #{tpu_custom_call.1} parent=31 // pred_check
          %p222 = pneg %p56
        $region34: #{tpu_custom_call.1} parent=31 // pred_check_branch
          %224 = sbr.rel (%p222) target = $region36
        $region35: #{tpu_custom_call.1} parent=31 // pred_region
          %225 = dma.done %s218, 512
        $region36: #{tpu_custom_call.1} parent=31 // pred_fallthru
          _
        // Predicated region
        $region37: #{tpu_custom_call.1} parent=31 // pred_check
          %p226 = pneg %p82
        $region38: #{tpu_custom_call.1} parent=31 // pred_check_branch
          %228 = sbr.rel (%p226) target = $region40
        $region39: #{tpu_custom_call.1} parent=31 // pred_region
          %229 = dma.done [#allocation6], 128
        $region40: #{tpu_custom_call.1} parent=31 // pred_fallthru
          _
        // Predicated region
        $region41: #{tpu_custom_call.1} parent=31 // pred_check
          %p230 = pneg %p108
        $region42: #{tpu_custom_call.1} parent=31 // pred_check_branch
          %232 = sbr.rel (%p230) target = $region44
        $region43: #{tpu_custom_call.1} parent=31 // pred_region
          %233 = dma.done [#allocation6], 128
        $region44: #{tpu_custom_call.1} parent=31 // pred_fallthru
          _
        %s234 = sand.u32 %s43, 1
        %s235 = scalar_lea.sflag [#allocation3], %s234
        %s236 = sand.u32 %s43, 1
        %s237 = smul.addr %s236, 32
        %s238 = scalar_lea.vmem [#allocation2], %s237
        %p239 = pneg %p56
        %p240 = pneg %p53
        %p241 = pneg %p82
        %p242 = pneg %p79
        %p243 = pneg %p108
        %p244 = pneg %p105
        %p245 = pneg %p136
        %p246 = pneg %p133
        %s247 = sand.u32 %s123, 1
        %s248 = scalar_lea.sflag [#allocation4], %s247
        %s249 = sand.u32 %s123, 1
        %s250 = smul.addr %s249, 32
        %s251 = scalar_lea.vmem [#allocation8], %s250
        %s252 = smul.u32 8, %s26
        %s253 = smul.u32 8, %s26
        %s254 = smul.u32 8, %s26
        %s255 = smul.u32 8, %s26
        %v256 = vld [vmem:[%s221] sm:$0xf]
        %v257 = vld [vmem:[%s221 + $0x4] sm:$0xf]
        %v258 = vld [vmem:[%s221 + $0x8] sm:$0xf]
        %v259 = vld [vmem:[%s221 + $0xc] sm:$0xf]
        %v260 = vld [vmem:[%s221 + $0x10] sm:$0xf]
        %v261 = vld [vmem:[%s221 + $0x14] sm:$0xf]
        %v262 = vld [vmem:[%s221 + $0x18] sm:$0xf]
        %v263 = vld [vmem:[%s221 + $0x1c] sm:$0xf]
        %v264 = vld [vmem:[#allocation5] sm:$0x1]
        %v265 = vld [vmem:[#allocation5 + $0x1] sm:$0x1]
        %v266 = vld [vmem:[#allocation5 + $0x2] sm:$0x1]
        %v267 = vld [vmem:[#allocation5 + $0x3] sm:$0x1]
        %v268 = vld [vmem:[#allocation5 + $0x4] sm:$0x1]
        %v269 = vld [vmem:[#allocation5 + $0x5] sm:$0x1]
        %v270 = vld [vmem:[#allocation5 + $0x6] sm:$0x1]
        %v271 = vld [vmem:[#allocation5 + $0x7] sm:$0x1]
        %v272 = vld [vmem:[#allocation7] sm:$0x1]
        %v273 = vld [vmem:[#allocation7 + $0x1] sm:$0x1]
        %v274 = vld [vmem:[#allocation7 + $0x2] sm:$0x1]
        %v275 = vld [vmem:[#allocation7 + $0x3] sm:$0x1]
        %v276 = vld [vmem:[#allocation7 + $0x4] sm:$0x1]
        %v277 = vld [vmem:[#allocation7 + $0x5] sm:$0x1]
        %v278 = vld [vmem:[#allocation7 + $0x6] sm:$0x1]
        %v279 = vld [vmem:[#allocation7 + $0x7] sm:$0x1]
        %280 = vrot.lane.b32.xlu0 %v256, 127
        %v281 = vpop.permute.xlu0 %280
        %282 = vrot.lane.b32.xlu0 %v257, 127
        %v283 = vpop.permute.xlu0 %282
        %284 = vrot.lane.b32.xlu0 %v258, 127
        %v285 = vpop.permute.xlu0 %284
        %286 = vrot.lane.b32.xlu0 %v259, 127
        %v287 = vpop.permute.xlu0 %286
        %288 = vrot.lane.b32.xlu0 %v260, 127
        %v289 = vpop.permute.xlu0 %288
        %290 = vrot.lane.b32.xlu0 %v261, 127
        %v291 = vpop.permute.xlu0 %290
        %292 = vrot.lane.b32.xlu0 %v262, 127
        %v293 = vpop.permute.xlu0 %292
        %294 = vrot.lane.b32.xlu0 %v263, 127
        %v295 = vpop.permute.xlu0 %294
        %296 = vrot.lane.b32.xlu0 %v256, 1
        %v297 = vpop.permute.xlu0 %296
        %298 = vrot.lane.b32.xlu0 %v257, 1
        %v299 = vpop.permute.xlu0 %298
        %300 = vrot.lane.b32.xlu0 %v258, 1
        %v301 = vpop.permute.xlu0 %300
        %302 = vrot.lane.b32.xlu0 %v259, 1
        %v303 = vpop.permute.xlu0 %302
        %304 = vrot.lane.b32.xlu0 %v260, 1
        %v305 = vpop.permute.xlu0 %304
        %306 = vrot.lane.b32.xlu0 %v261, 1
        %v307 = vpop.permute.xlu0 %306
        %308 = vrot.lane.b32.xlu0 %v262, 1
        %v309 = vpop.permute.xlu0 %308
        %310 = vrot.lane.b32.xlu0 %v263, 1
        %v311 = vpop.permute.xlu0 %310
        %v312 = vlaneseq
        %v313 = vand.u32 %v312, 127
        %vm314 = vcmp.lt.s32.totalorder %v313, 0
        %v315 = vsub.s32 0, %v313
        %v316 = vsel %vm314, %v315, %v313
        %v317 = vshrl.u32 %v316, 1
        %v318 = vand.u32 %v316, 1
        %v319 = vsub.s32 0, %v318
        %v320 = vsel %vm314, %v319, %v318
        %vm321 = vcmp.ne.s32.totalorder %v320, 0
        %vm322 = vcmp.lt.s32.totalorder %v320, 0
        %vm323 = vmand %vm322, %vm321
        %v324 = vadd.s32 %v320, 2
        %v325 = vsel %vm323, %v324, %v320
        %vm326 = vcmp.eq.s32.totalorder %v325, 0
        %v327 = vsel %vm326, %v281, %v297
        %v328 = vsel %vm326, %v283, %v299
        %v329 = vsel %vm326, %v285, %v301
        %v330 = vsel %vm326, %v287, %v303
        %v331 = vsel %vm326, %v289, %v305
        %v332 = vsel %vm326, %v291, %v307
        %v333 = vsel %vm326, %v293, %v309
        %v334 = vsel %vm326, %v295, %v311
        %v343 = vlaneseq
        %v344 = vshrl.u32 %v343, 7
        %v345 = vsub.s32 0, %v344
        %v346 = vrot.slane %v264, %v345
        %v347 = vlaneseq
        %v348 = vshrl.u32 %v347, 7
        %v349 = vsub.s32 0, %v348
        %v350 = vrot.slane %v265, %v349
        %v351 = vlaneseq
        %v352 = vshrl.u32 %v351, 7
        %v353 = vsub.s32 0, %v352
        %v354 = vrot.slane %v266, %v353
        %v355 = vlaneseq
        %v356 = vshrl.u32 %v355, 7
        %v357 = vsub.s32 0, %v356
        %v358 = vrot.slane %v267, %v357
        %v359 = vlaneseq
        %v360 = vshrl.u32 %v359, 7
        %v361 = vsub.s32 0, %v360
        %v362 = vrot.slane %v268, %v361
        %v363 = vlaneseq
        %v364 = vshrl.u32 %v363, 7
        %v365 = vsub.s32 0, %v364
        %v366 = vrot.slane %v269, %v365
        %v367 = vlaneseq
        %v368 = vshrl.u32 %v367, 7
        %v369 = vsub.s32 0, %v368
        %v370 = vrot.slane %v270, %v369
        %v371 = vlaneseq
        %v372 = vshrl.u32 %v371, 7
        %v373 = vsub.s32 0, %v372
        %v374 = vrot.slane %v271, %v373
        %v383 = vmul.f32 %v256, %v346
        %v384 = vmul.f32 %v257, %v350
        %v385 = vmul.f32 %v258, %v354
        %v386 = vmul.f32 %v259, %v358
        %v387 = vmul.f32 %v260, %v362
        %v388 = vmul.f32 %v261, %v366
        %v389 = vmul.f32 %v262, %v370
        %v390 = vmul.f32 %v263, %v374
        %v399 = vlaneseq
        %v400 = vshrl.u32 %v399, 7
        %v401 = vsub.s32 0, %v400
        %v402 = vrot.slane %v272, %v401
        %v403 = vlaneseq
        %v404 = vshrl.u32 %v403, 7
        %v405 = vsub.s32 0, %v404
        %v406 = vrot.slane %v273, %v405
        %v407 = vlaneseq
        %v408 = vshrl.u32 %v407, 7
        %v409 = vsub.s32 0, %v408
        %v410 = vrot.slane %v274, %v409
        %v411 = vlaneseq
        %v412 = vshrl.u32 %v411, 7
        %v413 = vsub.s32 0, %v412
        %v414 = vrot.slane %v275, %v413
        %v415 = vlaneseq
        %v416 = vshrl.u32 %v415, 7
        %v417 = vsub.s32 0, %v416
        %v418 = vrot.slane %v276, %v417
        %v419 = vlaneseq
        %v420 = vshrl.u32 %v419, 7
        %v421 = vsub.s32 0, %v420
        %v422 = vrot.slane %v277, %v421
        %v423 = vlaneseq
        %v424 = vshrl.u32 %v423, 7
        %v425 = vsub.s32 0, %v424
        %v426 = vrot.slane %v278, %v425
        %v427 = vlaneseq
        %v428 = vshrl.u32 %v427, 7
        %v429 = vsub.s32 0, %v428
        %v430 = vrot.slane %v279, %v429
        %v439 = vmul.f32 %v327, %v402
        %v440 = vmul.f32 %v328, %v406
        %v441 = vmul.f32 %v329, %v410
        %v442 = vmul.f32 %v330, %v414
        %v443 = vmul.f32 %v331, %v418
        %v444 = vmul.f32 %v332, %v422
        %v445 = vmul.f32 %v333, %v426
        %v446 = vmul.f32 %v334, %v430
        %v447 = vadd.f32 %v383, %v439
        %v448 = vadd.f32 %v384, %v440
        %v449 = vadd.f32 %v385, %v441
        %v450 = vadd.f32 %v386, %v442
        %v451 = vadd.f32 %v387, %v443
        %v452 = vadd.f32 %v388, %v444
        %v453 = vadd.f32 %v389, %v445
        %v454 = vadd.f32 %v390, %v446
        %455 = vst [vmem:[%s251] sm:$0xf] %v447
        %456 = vst [vmem:[%s251 + $0x4] sm:$0xf] %v448
        %457 = vst [vmem:[%s251 + $0x8] sm:$0xf] %v449
        %458 = vst [vmem:[%s251 + $0xc] sm:$0xf] %v450
        %459 = vst [vmem:[%s251 + $0x10] sm:$0xf] %v451
        %460 = vst [vmem:[%s251 + $0x14] sm:$0xf] %v452
        %461 = vst [vmem:[%s251 + $0x18] sm:$0xf] %v453
        %462 = vst [vmem:[%s251 + $0x1c] sm:$0xf] %v454
        %s463 = sand.u32 %s123, 1
        %s464 = scalar_lea.sflag [#allocation4], %s463
        %s465 = sand.u32 %s123, 1
        %s466 = smul.addr %s465, 32
        %s467 = scalar_lea.vmem [#allocation8], %s466
        // Predicated region
        $region45: #{tpu_custom_call.1} parent=31 // pred_check
          %p468 = pneg %p133
        $region46: #{tpu_custom_call.1} parent=31 // pred_check_branch
          %470 = sbr.rel (%p468) target = $region48
        $region47: #{tpu_custom_call.1} parent=31 // pred_region
          %s471 = smul.u32 8, %s26
          %s473 = ssub.s32 512, 512
          %474 = vsyncadd %s464, %s473
          %s475 = smul.addr %s25, 8
          %s476 = sadd.s32 %s471, %s475
          %s477 = smul.addr %s476, 64
          %s478 = scalar_lea.hbm %s3, %s477
          %s479 = sshll.u32 %s467, 4
          %s480 = int_to_ptr.vmem [resolvable:$true] %s479
          %485 = dma.vmem_to_hbm [thread:$0]  %s480, 512, %s478, %s464, 64, 64, 4
        $region48: #{tpu_custom_call.1} parent=31 // pred_fallthru
          _
      $region32: #{tpu_custom_call.1} parent=5 // pred_fallthru
        _
      %p486 = scmp.le.s32.totalorder 2, %s16
      // Predicated region
      $region49: #{tpu_custom_call.1} parent=5 // pred_check
        %p487 = pneg %p486
      $region50: #{tpu_custom_call.1} parent=5 // pred_check_branch
        %489 = sbr.rel (%p487) target = $region52
      $region51: #{tpu_custom_call.1} parent=5 // pred_region
        %s490 = ssub.s32 %s16, 2
        // Predicated region
        $region53: #{tpu_custom_call.1} parent=51 // pred_check
          %p491 = pneg %p139
        $region54: #{tpu_custom_call.1} parent=51 // pred_check_branch
          %493 = sbr.rel (%p491) target = $region56
        $region55: #{tpu_custom_call.1} parent=51 // pred_region
          %s494 = sand.u32 %s124, 1
          %s495 = scalar_lea.sflag [#allocation4], %s494
          %s496 = sand.u32 %s124, 1
          %s497 = smul.addr %s496, 32
          %s498 = scalar_lea.vmem [#allocation8], %s497
          %499 = dma.done %s495, 512
        $region56: #{tpu_custom_call.1} parent=51 // pred_fallthru
          _
      $region52: #{tpu_custom_call.1} parent=5 // pred_fallthru
        _
    $region6: #{tpu_custom_call.1} parent=1 // loop_footer
      %s20 = sadd.s32 1, %s16
    $region7: #{tpu_custom_call.1} parent=1 // loop_footer_branch
      %15 = sbr.rel target = $region3
    $region8: #{tpu_custom_call.1} parent=1 // loop_exit
      _
    %500 = vsyncpa [#allocation3], 1
    %s501 = scalar_lea.sflag [#allocation3], 1
    %502 = vsyncpa %s501, 1
    %503 = vsyncpa [#allocation6], 1
    %504 = vsyncpa [#allocation4], 1
    %s505 = scalar_lea.sflag [#allocation4], 1
    %506 = vsyncpa %s505, 1

</llo_original>
